<compile_context>
chip_gen: v6e
topology: v6e:2x2x1
jax: 0.10.0
libtpu: 0.0.40
codegen_flags: <defaults>
</compile_context>

<pallas_src>
import functools

import jax
import jax.numpy as jnp
from jax import lax
from jax.experimental import pallas as pl
from jax.experimental.pallas import tpu as pltpu


def _round_up(x, m):
    return ((x + m - 1) // m) * m


def _vmem_limit_bytes():
    """~3/4 of physical VMEM (v5e/v6e: 128 MiB, v7x: 64 MiB); safe fallback."""
    try:
        cap = getattr(pltpu.get_tpu_info(), "vmem_capacity_bytes", None)
        if cap:
            return int(cap) * 3 // 4
    except Exception:
        pass
    return 48 * 1024 * 1024


# ----------------------------------------------------------------------------
# Path A: whole batch resident -> single fused Linear+ReLU+Linear+BN kernel
# ----------------------------------------------------------------------------
def _mlp_bn_kernel(x_ref, w1_ref, b1_ref, w2_ref, gamma_ref, beta_ref, o_ref,
                   *, eps):
    # x_ref: (M, K) f32 | w1_ref: (K, K) bf16 | b1_ref: (1, K) f32
    # w2_ref: (K, N) bf16 | gamma/beta: (1, N) f32 | o_ref: (M, N) f32
    x = x_ref[...].astype(jnp.bfloat16)               # in-kernel cast (x read once, f32)
    h = jnp.dot(x, w1_ref[...], preferred_element_type=jnp.float32)
    h = jnp.maximum(h + b1_ref[...], 0.0)
    y = jnp.dot(h.astype(w2_ref.dtype), w2_ref[...],
                preferred_element_type=jnp.float32)
    # NOTE: linear2's bias b2 is omitted: a per-feature constant shift cancels
    # exactly in training-mode BatchNorm (y - batch_mean).
    mean = jnp.mean(y, axis=0, keepdims=True)
    var = jnp.mean(jnp.square(y - mean), axis=0, keepdims=True)   # biased variance
    scale = gamma_ref[...] * lax.rsqrt(var + eps)
    shift = beta_ref[...] - mean * scale
    o_ref[...] = (y * scale + shift).astype(o_ref.dtype)


def _fused_mlp_bn(x, w1_t, b1, w2_t, gamma, beta, *, eps):
    M, K = x.shape
    _, N = w2_t.shape
    resident = pl.Buffered(1)        # grid-invariant operands: no double buffering
    flops = 2 * M * K * K + 2 * M * K * N + 10 * M * N
    bytes_accessed = (M * K * 4 + K * K * 2 + K * 4 + K * N * 2
                      + 2 * N * 4 + M * N * 4)
    return pl.pallas_call(
        functools.partial(_mlp_bn_kernel, eps=eps),
        out_shape=jax.ShapeDtypeStruct((M, N), jnp.float32),
        grid_spec=pltpu.PrefetchScalarGridSpec(
            num_scalar_prefetch=0,
            grid=(1,),
            in_specs=[
                pl.BlockSpec((M, K), lambda i: (0, 0), pipeline_mode=resident),
                pl.BlockSpec((K, K), lambda i: (0, 0), pipeline_mode=resident),
                pl.BlockSpec((1, K), lambda i: (0, 0), pipeline_mode=resident),
                pl.BlockSpec((K, N), lambda i: (0, 0), pipeline_mode=resident),
                pl.BlockSpec((1, N), lambda i: (0, 0), pipeline_mode=resident),
                pl.BlockSpec((1, N), lambda i: (0, 0), pipeline_mode=resident),
            ],
            out_specs=pl.BlockSpec((M, N), lambda i: (0, 0)),
        ),
        compiler_params=pltpu.CompilerParams(
            dimension_semantics=("arbitrary",),
            vmem_limit_bytes=_vmem_limit_bytes(),
        ),
        cost_estimate=pl.CostEstimate(flops=flops, transcendentals=0,
                                      bytes_accessed=bytes_accessed),
    )(
        x,
        w1_t,
        b1.reshape(1, K).astype(jnp.float32),
        w2_t,
        gamma.reshape(1, N).astype(jnp.float32),
        beta.reshape(1, N).astype(jnp.float32),
    )


# ----------------------------------------------------------------------------
# Path B: tiled MLP (bf16 y writeback) + feature-tiled BatchNorm kernel
# ----------------------------------------------------------------------------
def _mlp_kernel(x_ref, w1_ref, b1_ref, w2_ref, y_ref):
    x = x_ref[...].astype(jnp.bfloat16)               # in-kernel cast
    h = jnp.dot(x, w1_ref[...], preferred_element_type=jnp.float32)
    h = jnp.maximum(h + b1_ref[...], 0.0)
    y = jnp.dot(h.astype(w2_ref.dtype), w2_ref[...],
                preferred_element_type=jnp.float32)
    y_ref[...] = y.astype(y_ref.dtype)                # bf16 writeback (half the bytes)


def _tiled_mlp(x, w1_t, b1, w2_t, *, tm):
    M, K = x.shape
    _, N = w2_t.shape
    tm_eff = min(tm, _round_up(M, 8))                 # tm=256 fills the 256x256 MXU
    Mp = _round_up(M, tm_eff)
    if Mp != M:
        # TODO(synk): masked partial last tile instead of a padded HBM copy of x.
        x = jnp.pad(x, ((0, Mp - M), (0, 0)))
    resident = pl.Buffered(1)
    flops = 2 * Mp * K * K + 2 * Mp * K * N
    bytes_accessed = Mp * K * 4 + K * K * 2 + K * 4 + K * N * 2 + Mp * N * 2
    y = pl.pallas_call(
        _mlp_kernel,
        out_shape=jax.ShapeDtypeStruct((Mp, N), jnp.bfloat16),
        grid_spec=pltpu.PrefetchScalarGridSpec(
            num_scalar_prefetch=0,
            grid=(Mp // tm_eff,),
            in_specs=[
                pl.BlockSpec((tm_eff, K), lambda i: (i, 0)),       # x pipelined
                pl.BlockSpec((K, K), lambda i: (0, 0), pipeline_mode=resident),
                pl.BlockSpec((1, K), lambda i: (0, 0), pipeline_mode=resident),
                pl.BlockSpec((K, N), lambda i: (0, 0), pipeline_mode=resident),
            ],
            out_specs=pl.BlockSpec((tm_eff, N), lambda i: (i, 0)),
        ),
        compiler_params=pltpu.CompilerParams(
            dimension_semantics=("parallel",),
            vmem_limit_bytes=_vmem_limit_bytes(),
        ),
        cost_estimate=pl.CostEstimate(flops=flops, transcendentals=0,
                                      bytes_accessed=bytes_accessed),
    )(x, w1_t, b1.reshape(1, K).astype(jnp.float32), w2_t)
    return y[:M] if Mp != M else y


def _bn_kernel(y_ref, gamma_ref, beta_ref, o_ref, *, eps):
    y = y_ref[...].astype(jnp.float32)                # (B, tn): full batch per block
    mean = jnp.mean(y, axis=0, keepdims=True)
    var = jnp.mean(jnp.square(y - mean), axis=0, keepdims=True)   # biased variance
    scale = gamma_ref[...] * lax.rsqrt(var + eps)
    shift = beta_ref[...] - mean * scale
    o_ref[...] = (y * scale + shift).astype(o_ref.dtype)


def _pick_feature_tile(N):
    # Prefer >= 2 feature blocks (megacore + pipelining) with lane-dense (>=128) tiles.
    for c in (256, 128):
        if N % c == 0 and N // c >= 2:
            return c
    for c in (512, 256, 128):
        if N % c == 0:
            return c
    return N


def _batchnorm1d(y, gamma, beta, *, eps):
    B, N = y.shape
    tn = _pick_feature_tile(N)
    # TODO(synk): switch to two-pass (sum/sumsq then normalize) BN if B*tn blocks
    # ever exceed VMEM for very large batches.
    return pl.pallas_call(
        functools.partial(_bn_kernel, eps=eps),
        out_shape=jax.ShapeDtypeStruct((B, N), jnp.float32),
        grid_spec=pltpu.PrefetchScalarGridSpec(
            num_scalar_prefetch=0,
            grid=(N // tn,),
            in_specs=[
                pl.BlockSpec((B, tn), lambda j: (0, j)),
                pl.BlockSpec((1, tn), lambda j: (0, j)),
                pl.BlockSpec((1, tn), lambda j: (0, j)),
            ],
            out_specs=pl.BlockSpec((B, tn), lambda j: (0, j)),
        ),
        compiler_params=pltpu.CompilerParams(
            dimension_semantics=("parallel",),
            vmem_limit_bytes=_vmem_limit_bytes(),
        ),
        cost_estimate=pl.CostEstimate(
            flops=8 * B * N, transcendentals=N,
            bytes_accessed=B * N * (y.dtype.itemsize + 4) + 2 * N * 4),
    )(y, gamma.reshape(1, N).astype(jnp.float32),
      beta.reshape(1, N).astype(jnp.float32))


# ----------------------------------------------------------------------------
# Projection module (parameters + forward)
# ----------------------------------------------------------------------------
def init_projection_params(key, in_dim, out_dim):
    """PyTorch-Linear-style init; weights stored transposed (in, out) in bf16."""
    k1, k2, k3, k4 = jax.random.split(key, 4)
    bound = 1.0 / float(in_dim) ** 0.5
    return dict(
        w1_t=jax.random.uniform(k1, (in_dim, in_dim), jnp.float32,
                                -bound, bound).astype(jnp.bfloat16),
        b1=jax.random.uniform(k2, (in_dim,), jnp.float32, -bound, bound),
        w2_t=jax.random.uniform(k3, (in_dim, out_dim), jnp.float32,
                                -bound, bound).astype(jnp.bfloat16),
        # b2 kept for module fidelity / reference; the kernels skip it because it
        # cancels exactly under training-mode BatchNorm.
        b2=jax.random.uniform(k4, (out_dim,), jnp.float32, -bound, bound),
        gamma=jnp.ones((out_dim,), jnp.float32),
        beta=jnp.zeros((out_dim,), jnp.float32),
    )


def projection_forward(params, x, *, tm=256, eps=1e-5, fuse_bn=None):
    M, K = x.shape
    N = params["w2_t"].shape[1]
    if fuse_bn is None:
        # Fully-fused path when the whole batch (x, h, y, out + weights) fits VMEM.
        budget = _vmem_limit_bytes() * 6 // 10
        est = (M * K * 4 + K * K * 2 + K * N * 2      # x, W1, W2
               + 2 * M * K * 4 + 2 * M * N * 4)       # h + y/out intermediates (f32)
        fuse_bn = (M <= 1024) and (est <= budget)
    if fuse_bn:
        return _fused_mlp_bn(x, params["w1_t"], params["b1"], params["w2_t"],
                             params["gamma"], params["beta"], eps=eps)
    y = _tiled_mlp(x, params["w1_t"], params["b1"], params["w2_t"], tm=tm)
    return _batchnorm1d(y, params["gamma"], params["beta"], eps=eps)


def projection_reference(params, x, eps=1e-5):
    """Pure-JAX reference with identical (bf16 matmul, f32 accumulate) math.
    Keeps b2 so it also verifies the b2-cancellation used by the kernels."""
    xb = x.astype(jnp.bfloat16)
    h = jnp.dot(xb, params["w1_t"], preferred_element_type=jnp.float32) + params["b1"]
    h = jnp.maximum(h, 0.0)
    y = jnp.dot(h.astype(jnp.bfloat16), params["w2_t"],
                preferred_element_type=jnp.float32) + params["b2"]
    mean = jnp.mean(y, axis=0, keepdims=True)
    var = jnp.mean(jnp.square(y - mean), axis=0, keepdims=True)
    return (y - mean) * lax.rsqrt(var + eps) * params["gamma"] + params["beta"]


if __name__ == "__main__":
    # Small shapes consistent with the module (default 2048 -> 512, scaled down).
    batch, in_dim, out_dim = 256, 256, 128

    key = jax.random.PRNGKey(0)
    kx, kp = jax.random.split(key)
    x = jax.random.normal(kx, (batch, in_dim), jnp.float32)
    params = init_projection_params(kp, in_dim, out_dim)

    # Path A: whole batch resident -> single fused Linear+ReLU+Linear+BN kernel.
    out = jax.block_until_ready(projection_forward(params, x))
    ref = projection_reference(params, x)
    assert out.shape == (batch, out_dim)
    assert jnp.allclose(out, ref, atol=1e-2, rtol=1e-2), "fused path mismatch"

    # Path B: larger batch -> tiled MLP (bf16 y writeback) + feature-tiled BN.
    x2 = jax.random.normal(jax.random.fold_in(kx, 1), (768, in_dim), jnp.float32)
    out2 = jax.block_until_ready(projection_forward(params, x2, fuse_bn=False))
    ref2 = projection_reference(params, x2)
    assert out2.shape == (768, out_dim)
    # slightly looser: the intermediate y is quantized to bf16 on this path
    assert jnp.allclose(out2, ref2, atol=2e-2, rtol=2e-2), "tiled path mismatch"

    print("KERNEL_OK")
</pallas_src>

<mosaic_0001>
module attributes {stable_mosaic.version = 11 : i64} {
  func.func @_mlp_bn_kernel(%arg0: i32, %arg1: memref<256x256xf32, #tpu.memory_space<vmem>>, %arg2: memref<256x256xbf16, #tpu.memory_space<vmem>>, %arg3: memref<1x256xf32, #tpu.memory_space<vmem>>, %arg4: memref<256x128xbf16, #tpu.memory_space<vmem>>, %arg5: memref<1x128xf32, #tpu.memory_space<vmem>>, %arg6: memref<1x128xf32, #tpu.memory_space<vmem>>, %arg7: memref<256x128xf32, #tpu.memory_space<vmem>>) attributes {dimension_semantics = [#tpu.dimension_semantics<arbitrary>], iteration_bounds = array<i64: 1>, scalar_prefetch = 0 : i64, scratch_operands = 0 : i64, tpu.core_type = #tpu.core_type<tc>, window_params = [{pipeline_mode = #tpu.pipeline_mode<synchronous>, transform_indices = @transform_0, window_bounds = array<i64: 256, 256>}, {pipeline_mode = #tpu.pipeline_mode<synchronous>, transform_indices = @transform_1, window_bounds = array<i64: 256, 256>}, {pipeline_mode = #tpu.pipeline_mode<synchronous>, transform_indices = @transform_2, window_bounds = array<i64: 1, 256>}, {pipeline_mode = #tpu.pipeline_mode<synchronous>, transform_indices = @transform_3, window_bounds = array<i64: 256, 128>}, {pipeline_mode = #tpu.pipeline_mode<synchronous>, transform_indices = @transform_4, window_bounds = array<i64: 1, 128>}, {pipeline_mode = #tpu.pipeline_mode<synchronous>, transform_indices = @transform_5, window_bounds = array<i64: 1, 128>}, {pipeline_mode = #tpu.pipeline_mode<synchronous>, transform_indices = @transform_6, window_bounds = array<i64: 256, 128>}]} {
    %c0 = arith.constant 0 : index
    %c0_0 = arith.constant 0 : index
    %0 = vector.load %arg1[%c0, %c0_0] : memref<256x256xf32, #tpu.memory_space<vmem>>, vector<256x256xf32>
    %1 = arith.truncf %0 : vector<256x256xf32> to vector<256x256xbf16>
    %c0_1 = arith.constant 0 : index
    %c0_2 = arith.constant 0 : index
    %2 = vector.load %arg2[%c0_1, %c0_2] : memref<256x256xbf16, #tpu.memory_space<vmem>>, vector<256x256xbf16>
    %cst = arith.constant dense<0.000000e+00> : vector<256x256xf32>
    %3 = tpu.matmul %1, %2, %cst {dimension_numbers = #tpu.dot_dimension_numbers<[1], [0], [0], [1], [0, 0, 1, 1], [], []>} : vector<256x256xbf16>, vector<256x256xbf16>, vector<256x256xf32> -> vector<256x256xf32>
    %c0_3 = arith.constant 0 : index
    %c0_4 = arith.constant 0 : index
    %4 = vector.load %arg3[%c0_3, %c0_4] : memref<1x256xf32, #tpu.memory_space<vmem>>, vector<1x256xf32>
    %5 = vector.broadcast %4 : vector<1x256xf32> to vector<256x256xf32>
    %6 = arith.addf %3, %5 : vector<256x256xf32>
    %cst_5 = arith.constant 0.000000e+00 : f32
    %7 = vector.broadcast %cst_5 : f32 to vector<256x256xf32>
    %8 = arith.maximumf %6, %7 : vector<256x256xf32>
    %9 = arith.truncf %8 : vector<256x256xf32> to vector<256x256xbf16>
    %c0_6 = arith.constant 0 : index
    %c0_7 = arith.constant 0 : index
    %10 = vector.load %arg4[%c0_6, %c0_7] : memref<256x128xbf16, #tpu.memory_space<vmem>>, vector<256x128xbf16>
    %cst_8 = arith.constant dense<0.000000e+00> : vector<256x128xf32>
    %11 = tpu.matmul %9, %10, %cst_8 {dimension_numbers = #tpu.dot_dimension_numbers<[1], [0], [0], [1], [0, 0, 1, 1], [], []>} : vector<256x256xbf16>, vector<256x128xbf16>, vector<256x128xf32> -> vector<256x128xf32>
    %cst_9 = arith.constant dense<0.000000e+00> : vector<128xf32>
    %12 = vector.multi_reduction <add>, %11, %cst_9 [0] : vector<256x128xf32> to vector<128xf32>
    %13 = vector.shape_cast %12 : vector<128xf32> to vector<1x128xf32>
    %cst_10 = arith.constant 2.560000e+02 : f32
    %14 = vector.broadcast %cst_10 : f32 to vector<1x128xf32>
    %15 = arith.divf %13, %14 : vector<1x128xf32>
    %16 = vector.broadcast %15 : vector<1x128xf32> to vector<256x128xf32>
    %17 = arith.subf %11, %16 : vector<256x128xf32>
    %18 = arith.mulf %17, %17 : vector<256x128xf32>
    %cst_11 = arith.constant dense<0.000000e+00> : vector<128xf32>
    %19 = vector.multi_reduction <add>, %18, %cst_11 [0] : vector<256x128xf32> to vector<128xf32>
    %20 = vector.shape_cast %19 : vector<128xf32> to vector<1x128xf32>
    %cst_12 = arith.constant 2.560000e+02 : f32
    %21 = vector.broadcast %cst_12 : f32 to vector<1x128xf32>
    %22 = arith.divf %20, %21 : vector<1x128xf32>
    %c0_13 = arith.constant 0 : index
    %c0_14 = arith.constant 0 : index
    %23 = vector.load %arg5[%c0_13, %c0_14] : memref<1x128xf32, #tpu.memory_space<vmem>>, vector<1x128xf32>
    %cst_15 = arith.constant 9.99999974E-6 : f32
    %24 = vector.broadcast %cst_15 : f32 to vector<1x128xf32>
    %25 = arith.addf %22, %24 : vector<1x128xf32>
    %26 = math.rsqrt %25 : vector<1x128xf32>
    %27 = arith.mulf %23, %26 : vector<1x128xf32>
    %c0_16 = arith.constant 0 : index
    %c0_17 = arith.constant 0 : index
    %28 = vector.load %arg6[%c0_16, %c0_17] : memref<1x128xf32, #tpu.memory_space<vmem>>, vector<1x128xf32>
    %29 = arith.mulf %15, %27 : vector<1x128xf32>
    %30 = arith.subf %28, %29 : vector<1x128xf32>
    %31 = vector.broadcast %27 : vector<1x128xf32> to vector<256x128xf32>
    %32 = arith.mulf %11, %31 : vector<256x128xf32>
    %33 = vector.broadcast %30 : vector<1x128xf32> to vector<256x128xf32>
    %34 = arith.addf %32, %33 : vector<256x128xf32>
    %c0_18 = arith.constant 0 : index
    %c0_19 = arith.constant 0 : index
    %35 = vector.load %arg7[%c0_18, %c0_19] : memref<256x128xf32, #tpu.memory_space<vmem>>, vector<256x128xf32>
    tpu.vector_store %arg7[%c0_18, %c0_19], %34 {strides = array<i32>} : memref<256x128xf32, #tpu.memory_space<vmem>>, vector<256x128xf32>,
    return
  }
  func.func @transform_0(%arg0: i32) -> (i32, i32) {
    %c0_i32 = arith.constant 0 : i32
    %c0_i32_0 = arith.constant 0 : i32
    %c0_i32_1 = arith.constant 0 : i32
    return %c0_i32, %c0_i32_0 : i32, i32
  }
  func.func @transform_1(%arg0: i32) -> (i32, i32) {
    %c0_i32 = arith.constant 0 : i32
    %c0_i32_0 = arith.constant 0 : i32
    %c0_i32_1 = arith.constant 0 : i32
    return %c0_i32, %c0_i32_0 : i32, i32
  }
  func.func @transform_2(%arg0: i32) -> (i32, i32) {
    %c0_i32 = arith.constant 0 : i32
    %c0_i32_0 = arith.constant 0 : i32
    %c0_i32_1 = arith.constant 0 : i32
    return %c0_i32, %c0_i32_0 : i32, i32
  }
  func.func @transform_3(%arg0: i32) -> (i32, i32) {
    %c0_i32 = arith.constant 0 : i32
    %c0_i32_0 = arith.constant 0 : i32
    %c0_i32_1 = arith.constant 0 : i32
    return %c0_i32, %c0_i32_0 : i32, i32
  }
  func.func @transform_4(%arg0: i32) -> (i32, i32) {
    %c0_i32 = arith.constant 0 : i32
    %c0_i32_0 = arith.constant 0 : i32
    %c0_i32_1 = arith.constant 0 : i32
    return %c0_i32, %c0_i32_0 : i32, i32
  }
  func.func @transform_5(%arg0: i32) -> (i32, i32) {
    %c0_i32 = arith.constant 0 : i32
    %c0_i32_0 = arith.constant 0 : i32
    %c0_i32_1 = arith.constant 0 : i32
    return %c0_i32, %c0_i32_0 : i32, i32
  }
  func.func @transform_6(%arg0: i32) -> (i32, i32) {
    %c0_i32 = arith.constant 0 : i32
    %c0_i32_0 = arith.constant 0 : i32
    %c0_i32_1 = arith.constant 0 : i32
    return %c0_i32, %c0_i32_0 : i32, i32
  }
}

</mosaic_0001>

<llo_original>
// kernel: tpu_custom_call.1
$region0: #{tpu_custom_call.1}
  #allocation0 [shape = 'u32[]', space=smem, size = 0x4, offset = 0x4, fixed_abs, tag = 'smem constant byte address 0x4 - core index']
  #allocation1 [shape = 'u32[144,128]{1,0:T(1,128)}', space=vmem, size = 0x12000, scoped, tag = 'internal scratch']
  %s0 = inlined_call_operand.hbm [shape: f32[256,256], index: 0, kind: input, shape index: {}]
  %s1 = inlined_call_operand.hbm [shape: bf16[256,256], index: 1, kind: input, shape index: {}]
  %s2 = inlined_call_operand.vmem [shape: f32[1,256], index: 2, kind: input, shape index: {}]
  %s3 = inlined_call_operand.hbm [shape: bf16[256,128], index: 3, kind: input, shape index: {}]
  %s4 = inlined_call_operand.vmem [shape: f32[1,128], index: 4, kind: input, shape index: {}]
  %s5 = inlined_call_operand.vmem [shape: f32[1,128], index: 5, kind: input, shape index: {}]
  %s6 = inlined_call_operand.hbm [shape: f32[256,128], index: 6, kind: output, shape index: {}]
  %s7 = sld [smem:[#allocation0]]
  $region46: #{tpu_custom_call.1} parent=0
    _
  %s9 = ssub.s32 1, %s7
  %s10 = scalar_select 0, %s9, %s7
  $region1: #{tpu_custom_call.1} parent=0
    #allocation2 [shape = 'u8[262144]{0}', space=vmem, size = 0x40000, scoped, tag = 'input window, operand 0, single buffered']
    #allocation3 [shape = 's32[1]{0}', space=sflag, size = 0x4, scoped, tag = 'scoped memory for tpu_custom_call.1']
    #allocation4 [shape = 's32[1]{0}', space=sflag, size = 0x4, scoped, tag = 'scoped memory for tpu_custom_call.1']
    #allocation5 [shape = 'u8[131072]{0}', space=vmem, size = 0x20000, scoped, tag = 'input window, operand 1, single buffered']
    #allocation6 [shape = 's32[1]{0}', space=sflag, size = 0x4, scoped, tag = 'scoped memory for tpu_custom_call.1']
    #allocation7 [shape = 'u8[65536]{0}', space=vmem, size = 0x10000, scoped, tag = 'input window, operand 3, single buffered']
    #allocation8 [shape = 'u8[131072]{0}', space=vmem, size = 0x20000, scoped, tag = 'output window, operand 0, single buffered']
    %11 = vsyncpa [#allocation3], 0
    %12 = vsyncpa [#allocation6], 0
    %13 = vsyncpa [#allocation4], 0
    // Predicated region
    $region2: #{tpu_custom_call.1} parent=1 // pred_check
      _
    $region3: #{tpu_custom_call.1} parent=1 // pred_check_branch
      %15 = sbr.rel (0) target = $region5
    $region4: #{tpu_custom_call.1} parent=1 // pred_region
      %s17 = ssub.s32 8192, 8192
      %18 = vsyncadd [#allocation3], %s17
      %s19 = sshll.u32 [#allocation2], 4
      %s20 = int_to_ptr.vmem [resolvable:$true] %s19
      %25 = dma.hbm_to_vmem [thread:$0]  %s0, 8192, %s20, [#allocation3], 256, 256, 16
    $region5: #{tpu_custom_call.1} parent=1 // pred_fallthru
      _
    // Predicated region
    $region6: #{tpu_custom_call.1} parent=1 // pred_check
      _
    $region7: #{tpu_custom_call.1} parent=1 // pred_check_branch
      %27 = sbr.rel (0) target = $region9
    $region8: #{tpu_custom_call.1} parent=1 // pred_region
      %s29 = ssub.s32 4096, 4096
      %30 = vsyncadd [#allocation6], %s29
      %s31 = sshll.u32 [#allocation5], 4
      %s32 = int_to_ptr.vmem [resolvable:$true] %s31
      %37 = dma.hbm_to_vmem [thread:$0]  %s1, 4096, %s32, [#allocation6], 128, 128, 8
    $region9: #{tpu_custom_call.1} parent=1 // pred_fallthru
      _
    // Predicated region
    $region10: #{tpu_custom_call.1} parent=1 // pred_check
      _
    $region11: #{tpu_custom_call.1} parent=1 // pred_check_branch
      %39 = sbr.rel (0) target = $region13
    $region12: #{tpu_custom_call.1} parent=1 // pred_region
      _
    $region13: #{tpu_custom_call.1} parent=1 // pred_fallthru
      _
    // Predicated region
    $region14: #{tpu_custom_call.1} parent=1 // pred_check
      _
    $region15: #{tpu_custom_call.1} parent=1 // pred_check_branch
      %41 = sbr.rel (0) target = $region17
    $region16: #{tpu_custom_call.1} parent=1 // pred_region
      %s43 = ssub.s32 2048, 2048
      %44 = vsyncadd [#allocation6], %s43
      %s45 = sshll.u32 [#allocation7], 4
      %s46 = int_to_ptr.vmem [resolvable:$true] %s45
      %51 = dma.hbm_to_vmem [thread:$0]  %s3, 2048, %s46, [#allocation6], 64, 64, 4
    $region17: #{tpu_custom_call.1} parent=1 // pred_fallthru
      _
    // Predicated region
    $region18: #{tpu_custom_call.1} parent=1 // pred_check
      _
    $region19: #{tpu_custom_call.1} parent=1 // pred_check_branch
      %53 = sbr.rel (0) target = $region21
    $region20: #{tpu_custom_call.1} parent=1 // pred_region
      _
    $region21: #{tpu_custom_call.1} parent=1 // pred_fallthru
      _
    // Predicated region
    $region22: #{tpu_custom_call.1} parent=1 // pred_check
      _
    $region23: #{tpu_custom_call.1} parent=1 // pred_check_branch
      %55 = sbr.rel (0) target = $region25
    $region24: #{tpu_custom_call.1} parent=1 // pred_region
      _
    $region25: #{tpu_custom_call.1} parent=1 // pred_fallthru
      _
    // Predicated region
    $region26: #{tpu_custom_call.1} parent=1 // pred_check
      _
    $region27: #{tpu_custom_call.1} parent=1 // pred_check_branch
      %57 = sbr.rel (0) target = $region29
    $region28: #{tpu_custom_call.1} parent=1 // pred_region
      %58 = dma.done [#allocation3], 8192
    $region29: #{tpu_custom_call.1} parent=1 // pred_fallthru
      _
    // Predicated region
    $region30: #{tpu_custom_call.1} parent=1 // pred_check
      _
    $region31: #{tpu_custom_call.1} parent=1 // pred_check_branch
      %60 = sbr.rel (0) target = $region33
    $region32: #{tpu_custom_call.1} parent=1 // pred_region
      %61 = dma.done [#allocation6], 4096
    $region33: #{tpu_custom_call.1} parent=1 // pred_fallthru
      _
    // Predicated region
    $region34: #{tpu_custom_call.1} parent=1 // pred_check
      _
    $region35: #{tpu_custom_call.1} parent=1 // pred_check_branch
      %63 = sbr.rel (0) target = $region37
    $region36: #{tpu_custom_call.1} parent=1 // pred_region
      %64 = dma.done [#allocation6], 2048
    $region37: #{tpu_custom_call.1} parent=1 // pred_fallthru
      _
    %v66 = vld [vmem:[#allocation2] sm:$0xff]
    %v67 = vld [vmem:[#allocation2 + $0x8] sm:$0xff]
    %v68 = vld [vmem:[#allocation2 + $0x10] sm:$0xff]
    %v69 = vld [vmem:[#allocation2 + $0x18] sm:$0xff]
    %v70 = vld [vmem:[#allocation2 + $0x20] sm:$0xff]
    %v71 = vld [vmem:[#allocation2 + $0x28] sm:$0xff]
    %v72 = vld [vmem:[#allocation2 + $0x30] sm:$0xff]
    %v73 = vld [vmem:[#allocation2 + $0x38] sm:$0xff]
    %v74 = vld [vmem:[#allocation2 + $0x40] sm:$0xff]
    %v75 = vld [vmem:[#allocation2 + $0x48] sm:$0xff]
    %v76 = vld [vmem:[#allocation2 + $0x50] sm:$0xff]
    %v77 = vld [vmem:[#allocation2 + $0x58] sm:$0xff]
    %v78 = vld [vmem:[#allocation2 + $0x60] sm:$0xff]
    %v79 = vld [vmem:[#allocation2 + $0x68] sm:$0xff]
    %v80 = vld [vmem:[#allocation2 + $0x70] sm:$0xff]
    %v81 = vld [vmem:[#allocation2 + $0x78] sm:$0xff]
    %v82 = vld [vmem:[#allocation2 + $0x80] sm:$0xff]
    %v83 = vld [vmem:[#allocation2 + $0x88] sm:$0xff]
    %v84 = vld [vmem:[#allocation2 + $0x90] sm:$0xff]
    %v85 = vld [vmem:[#allocation2 + $0x98] sm:$0xff]
    %v86 = vld [vmem:[#allocation2 + $0xa0] sm:$0xff]
    %v87 = vld [vmem:[#allocation2 + $0xa8] sm:$0xff]
    %v88 = vld [vmem:[#allocation2 + $0xb0] sm:$0xff]
    %v89 = vld [vmem:[#allocation2 + $0xb8] sm:$0xff]
    %v90 = vld [vmem:[#allocation2 + $0xc0] sm:$0xff]
    %v91 = vld [vmem:[#allocation2 + $0xc8] sm:$0xff]
    %v92 = vld [vmem:[#allocation2 + $0xd0] sm:$0xff]
    %v93 = vld [vmem:[#allocation2 + $0xd8] sm:$0xff]
    %v94 = vld [vmem:[#allocation2 + $0xe0] sm:$0xff]
    %v95 = vld [vmem:[#allocation2 + $0xe8] sm:$0xff]
    %v96 = vld [vmem:[#allocation2 + $0xf0] sm:$0xff]
    %v97 = vld [vmem:[#allocation2 + $0xf8] sm:$0xff]
    %v98 = vld [vmem:[#allocation2 + $0x100] sm:$0xff]
    %v99 = vld [vmem:[#allocation2 + $0x108] sm:$0xff]
    %v100 = vld [vmem:[#allocation2 + $0x110] sm:$0xff]
    %v101 = vld [vmem:[#allocation2 + $0x118] sm:$0xff]
    %v102 = vld [vmem:[#allocation2 + $0x120] sm:$0xff]
    %v103 = vld [vmem:[#allocation2 + $0x128] sm:$0xff]
    %v104 = vld [vmem:[#allocation2 + $0x130] sm:$0xff]
    %v105 = vld [vmem:[#allocation2 + $0x138] sm:$0xff]
    %v106 = vld [vmem:[#allocation2 + $0x140] sm:$0xff]
    %v107 = vld [vmem:[#allocation2 + $0x148] sm:$0xff]
    %v108 = vld [vmem:[#allocation2 + $0x150] sm:$0xff]
    %v109 = vld [vmem:[#allocation2 + $0x158] sm:$0xff]
    %v110 = vld [vmem:[#allocation2 + $0x160] sm:$0xff]
    %v111 = vld [vmem:[#allocation2 + $0x168] sm:$0xff]
    %v112 = vld [vmem:[#allocation2 + $0x170] sm:$0xff]
    %v113 = vld [vmem:[#allocation2 + $0x178] sm:$0xff]
    %v114 = vld [vmem:[#allocation2 + $0x180] sm:$0xff]
    %v115 = vld [vmem:[#allocation2 + $0x188] sm:$0xff]
    %v116 = vld [vmem:[#allocation2 + $0x190] sm:$0xff]
    %v117 = vld [vmem:[#allocation2 + $0x198] sm:$0xff]
    %v118 = vld [vmem:[#allocation2 + $0x1a0] sm:$0xff]
    %v119 = vld [vmem:[#allocation2 + $0x1a8] sm:$0xff]
    %v120 = vld [vmem:[#allocation2 + $0x1b0] sm:$0xff]
    %v121 = vld [vmem:[#allocation2 + $0x1b8] sm:$0xff]
    %v122 = vld [vmem:[#allocation2 + $0x1c0] sm:$0xff]
    %v123 = vld [vmem:[#allocation2 + $0x1c8] sm:$0xff]
    %v124 = vld [vmem:[#allocation2 + $0x1d0] sm:$0xff]
    %v125 = vld [vmem:[#allocation2 + $0x1d8] sm:$0xff]
    %v126 = vld [vmem:[#allocation2 + $0x1e0] sm:$0xff]
    %v127 = vld [vmem:[#allocation2 + $0x1e8] sm:$0xff]
    %v128 = vld [vmem:[#allocation2 + $0x1f0] sm:$0xff]
    %v129 = vld [vmem:[#allocation2 + $0x1f8] sm:$0xff]
    %v130 = vpack.c.bf16 %v68, %v66
    %v131 = vpack.c.bf16 %v69, %v67
    %v132 = vpack.c.bf16 %v72, %v70
    %v133 = vpack.c.bf16 %v73, %v71
    %v134 = vpack.c.bf16 %v76, %v74
    %v135 = vpack.c.bf16 %v77, %v75
    %v136 = vpack.c.bf16 %v80, %v78
    %v137 = vpack.c.bf16 %v81, %v79
    %v138 = vpack.c.bf16 %v84, %v82
    %v139 = vpack.c.bf16 %v85, %v83
    %v140 = vpack.c.bf16 %v88, %v86
    %v141 = vpack.c.bf16 %v89, %v87
    %v142 = vpack.c.bf16 %v92, %v90
    %v143 = vpack.c.bf16 %v93, %v91
    %v144 = vpack.c.bf16 %v96, %v94
    %v145 = vpack.c.bf16 %v97, %v95
    %v146 = vpack.c.bf16 %v100, %v98
    %v147 = vpack.c.bf16 %v101, %v99
    %v148 = vpack.c.bf16 %v104, %v102
    %v149 = vpack.c.bf16 %v105, %v103
    %v150 = vpack.c.bf16 %v108, %v106
    %v151 = vpack.c.bf16 %v109, %v107
    %v152 = vpack.c.bf16 %v112, %v110
    %v153 = vpack.c.bf16 %v113, %v111
    %v154 = vpack.c.bf16 %v116, %v114
    %v155 = vpack.c.bf16 %v117, %v115
    %v156 = vpack.c.bf16 %v120, %v118
    %v157 = vpack.c.bf16 %v121, %v119
    %v158 = vpack.c.bf16 %v124, %v122
    %v159 = vpack.c.bf16 %v125, %v123
    %v160 = vpack.c.bf16 %v128, %v126
    %v161 = vpack.c.bf16 %v129, %v127
    %v162 = vld [vmem:[#allocation5] sm:$0xff]
    %v163 = vld [vmem:[#allocation5 + $0x8] sm:$0xff]
    %v164 = vld [vmem:[#allocation5 + $0x10] sm:$0xff]
    %v165 = vld [vmem:[#allocation5 + $0x18] sm:$0xff]
    %v166 = vld [vmem:[#allocation5 + $0x20] sm:$0xff]
    %v167 = vld [vmem:[#allocation5 + $0x28] sm:$0xff]
    %v168 = vld [vmem:[#allocation5 + $0x30] sm:$0xff]
    %v169 = vld [vmem:[#allocation5 + $0x38] sm:$0xff]
    %v170 = vld [vmem:[#allocation5 + $0x40] sm:$0xff]
    %v171 = vld [vmem:[#allocation5 + $0x48] sm:$0xff]
    %v172 = vld [vmem:[#allocation5 + $0x50] sm:$0xff]
    %v173 = vld [vmem:[#allocation5 + $0x58] sm:$0xff]
    %v174 = vld [vmem:[#allocation5 + $0x60] sm:$0xff]
    %v175 = vld [vmem:[#allocation5 + $0x68] sm:$0xff]
    %v176 = vld [vmem:[#allocation5 + $0x70] sm:$0xff]
    %v177 = vld [vmem:[#allocation5 + $0x78] sm:$0xff]
    %v178 = vld [vmem:[#allocation5 + $0x80] sm:$0xff]
    %v179 = vld [vmem:[#allocation5 + $0x88] sm:$0xff]
    %v180 = vld [vmem:[#allocation5 + $0x90] sm:$0xff]
    %v181 = vld [vmem:[#allocation5 + $0x98] sm:$0xff]
    %v182 = vld [vmem:[#allocation5 + $0xa0] sm:$0xff]
    %v183 = vld [vmem:[#allocation5 + $0xa8] sm:$0xff]
    %v184 = vld [vmem:[#allocation5 + $0xb0] sm:$0xff]
    %v185 = vld [vmem:[#allocation5 + $0xb8] sm:$0xff]
    %v186 = vld [vmem:[#allocation5 + $0xc0] sm:$0xff]
    %v187 = vld [vmem:[#allocation5 + $0xc8] sm:$0xff]
    %v188 = vld [vmem:[#allocation5 + $0xd0] sm:$0xff]
    %v189 = vld [vmem:[#allocation5 + $0xd8] sm:$0xff]
    %v190 = vld [vmem:[#allocation5 + $0xe0] sm:$0xff]
    %v191 = vld [vmem:[#allocation5 + $0xe8] sm:$0xff]
    %v192 = vld [vmem:[#allocation5 + $0xf0] sm:$0xff]
    %v193 = vld [vmem:[#allocation5 + $0xf8] sm:$0xff]
    %v194 = vld [vmem:[%s2] sm:$0x3]
    %v196 = vlaneseq
    %v197 = vshrl.u32 %v196, 7
    %v198 = vsub.s32 0, %v197
    %v199 = vrot.slane %v194, %v198
    %v200 = vlaneseq
    %v201 = vshrl.u32 %v200, 7
    %v202 = vsub.s32 1, %v201
    %v203 = vrot.slane %v194, %v202
    %v238 = vunpack.c.l.b16 %v162
    %v239 = vunpack.c.h.b16 %v162
    %v240 = vunpack.c.l.b16 %v163
    %v241 = vunpack.c.h.b16 %v163
    %v242 = vunpack.c.l.b16 %v164
    %v243 = vunpack.c.h.b16 %v164
    %v244 = vunpack.c.l.b16 %v165
    %v245 = vunpack.c.h.b16 %v165
    %v246 = vunpack.c.l.b16 %v166
    %v247 = vunpack.c.h.b16 %v166
    %v248 = vunpack.c.l.b16 %v167
    %v249 = vunpack.c.h.b16 %v167
    %v250 = vunpack.c.l.b16 %v168
    %v251 = vunpack.c.h.b16 %v168
    %v252 = vunpack.c.l.b16 %v169
    %v253 = vunpack.c.h.b16 %v169
    %v254 = vunpack.c.l.b16 %v170
    %v255 = vunpack.c.h.b16 %v170
    %v256 = vunpack.c.l.b16 %v171
    %v257 = vunpack.c.h.b16 %v171
    %v258 = vunpack.c.l.b16 %v172
    %v259 = vunpack.c.h.b16 %v172
    %v260 = vunpack.c.l.b16 %v173
    %v261 = vunpack.c.h.b16 %v173
    %v262 = vunpack.c.l.b16 %v174
    %v263 = vunpack.c.h.b16 %v174
    %v264 = vunpack.c.l.b16 %v175
    %v265 = vunpack.c.h.b16 %v175
    %v266 = vunpack.c.l.b16 %v176
    %v267 = vunpack.c.h.b16 %v176
    %v268 = vunpack.c.l.b16 %v177
    %v269 = vunpack.c.h.b16 %v177
    %v270 = vunpack.c.l.b16 %v178
    %v271 = vunpack.c.h.b16 %v178
    %v272 = vunpack.c.l.b16 %v179
    %v273 = vunpack.c.h.b16 %v179
    %v274 = vunpack.c.l.b16 %v180
    %v275 = vunpack.c.h.b16 %v180
    %v276 = vunpack.c.l.b16 %v181
    %v277 = vunpack.c.h.b16 %v181
    %v278 = vunpack.c.l.b16 %v182
    %v279 = vunpack.c.h.b16 %v182
    %v280 = vunpack.c.l.b16 %v183
    %v281 = vunpack.c.h.b16 %v183
    %v282 = vunpack.c.l.b16 %v184
    %v283 = vunpack.c.h.b16 %v184
    %v284 = vunpack.c.l.b16 %v185
    %v285 = vunpack.c.h.b16 %v185
    %v286 = vunpack.c.l.b16 %v186
    %v287 = vunpack.c.h.b16 %v186
    %v288 = vunpack.c.l.b16 %v187
    %v289 = vunpack.c.h.b16 %v187
    %v290 = vunpack.c.l.b16 %v188
    %v291 = vunpack.c.h.b16 %v188
    %v292 = vunpack.c.l.b16 %v189
    %v293 = vunpack.c.h.b16 %v189
    %v294 = vunpack.c.l.b16 %v190
    %v295 = vunpack.c.h.b16 %v190
    %v296 = vunpack.c.l.b16 %v191
    %v297 = vunpack.c.h.b16 %v191
    %v298 = vunpack.c.l.b16 %v192
    %v299 = vunpack.c.h.b16 %v192
    %v300 = vunpack.c.l.b16 %v193
    %v301 = vunpack.c.h.b16 %v193
    %v302 = vpack.c.b16 %v240, %v238
    %v303 = vpack.c.b16 %v241, %v239
    %v304 = vpack.c.b16 %v244, %v242
    %v305 = vpack.c.b16 %v245, %v243
    %v306 = vpack.c.b16 %v248, %v246
    %v307 = vpack.c.b16 %v249, %v247
    %v308 = vpack.c.b16 %v252, %v250
    %v309 = vpack.c.b16 %v253, %v251
    %v310 = vpack.c.b16 %v256, %v254
    %v311 = vpack.c.b16 %v257, %v255
    %v312 = vpack.c.b16 %v260, %v258
    %v313 = vpack.c.b16 %v261, %v259
    %v314 = vpack.c.b16 %v264, %v262
    %v315 = vpack.c.b16 %v265, %v263
    %v316 = vpack.c.b16 %v268, %v266
    %v317 = vpack.c.b16 %v269, %v267
    %v318 = vpack.c.b16 %v272, %v270
    %v319 = vpack.c.b16 %v273, %v271
    %v320 = vpack.c.b16 %v276, %v274
    %v321 = vpack.c.b16 %v277, %v275
    %v322 = vpack.c.b16 %v280, %v278
    %v323 = vpack.c.b16 %v281, %v279
    %v324 = vpack.c.b16 %v284, %v282
    %v325 = vpack.c.b16 %v285, %v283
    %v326 = vpack.c.b16 %v288, %v286
    %v327 = vpack.c.b16 %v289, %v287
    %v328 = vpack.c.b16 %v292, %v290
    %v329 = vpack.c.b16 %v293, %v291
    %v330 = vpack.c.b16 %v296, %v294
    %v331 = vpack.c.b16 %v297, %v295
    %v332 = vpack.c.b16 %v300, %v298
    %v333 = vpack.c.b16 %v301, %v299
    %366 = vmatprep.subr.bf16.mxu0 %v317
    %367 = vmatpush1.bf16.msra.mxu0 %v316
    %368 = vmatprep.subr.bf16.mxu0 %v315
    %369 = vmatpush1.bf16.msra.mxu0 %v314
    %370 = vmatprep.subr.bf16.mxu0 %v313
    %371 = vmatpush1.bf16.msra.mxu0 %v312
    %372 = vmatprep.subr.bf16.mxu0 %v311
    %373 = vmatpush1.bf16.msra.mxu0 %v310
    %374 = vmatprep.subr.bf16.mxu0 %v309
    %375 = vmatpush1.bf16.msra.mxu0 %v308
    %376 = vmatprep.subr.bf16.mxu0 %v307
    %377 = vmatpush1.bf16.msra.mxu0 %v306
    %378 = vmatprep.subr.bf16.mxu0 %v305
    %379 = vmatpush1.bf16.msra.mxu0 %v304
    %380 = vmatprep.subr.bf16.mxu0 %v303
    %381 = vmatpush1.bf16.msra.mxu0 %v302
    %382 = vmatprep.subr.bf16.mxu0 %v333
    %383 = vmatpush2.bf16.msra.mxu0 %v332
    %384 = vmatprep.subr.bf16.mxu0 %v331
    %385 = vmatpush2.bf16.msra.mxu0 %v330
    %386 = vmatprep.subr.bf16.mxu0 %v329
    %387 = vmatpush2.bf16.msra.mxu0 %v328
    %388 = vmatprep.subr.bf16.mxu0 %v327
    %389 = vmatpush2.bf16.msra.mxu0 %v326
    %390 = vmatprep.subr.bf16.mxu0 %v325
    %391 = vmatpush2.bf16.msra.mxu0 %v324
    %392 = vmatprep.subr.bf16.mxu0 %v323
    %393 = vmatpush2.bf16.msra.mxu0 %v322
    %394 = vmatprep.subr.bf16.mxu0 %v321
    %395 = vmatpush2.bf16.msra.mxu0 %v320
    %396 = vmatprep.subr.bf16.mxu0 %v319
    %397 = vmatpush2.bf16.msra.mxu0 %v318
    %398 = vmatprep.mubr.bf16.mxu0 %v131
    %399 = vmatmul.mubr.bf16.gmra.mxu0 %v130
    %v400 = vpop.f32.mrf.mxu0
    %v401 = vadd.f32 %v199, %v400
    %v402 = vpop.f32.mrf.mxu0
    %v403 = vadd.f32 %v203, %v402
    %v404 = vpop.f32.mrf.mxu0
    %v405 = vadd.f32 %v199, %v404
    %v406 = vpop.f32.mrf.mxu0
    %v407 = vadd.f32 %v203, %v406
    %408 = vmatprep.mubr.bf16.mxu0 %v133
    %409 = vmatmul.mubr.bf16.gmra.mxu0 %v132
    %v410 = vpop.f32.mrf.mxu0
    %v411 = vadd.f32 %v199, %v410
    %v412 = vpop.f32.mrf.mxu0
    %v413 = vadd.f32 %v203, %v412
    %v414 = vpop.f32.mrf.mxu0
    %v415 = vadd.f32 %v199, %v414
    %v416 = vpop.f32.mrf.mxu0
    %v417 = vadd.f32 %v203, %v416
    %418 = vmatprep.mubr.bf16.mxu0 %v135
    %419 = vmatmul.mubr.bf16.gmra.mxu0 %v134
    %v420 = vpop.f32.mrf.mxu0
    %v421 = vadd.f32 %v199, %v420
    %v422 = vpop.f32.mrf.mxu0
    %v423 = vadd.f32 %v203, %v422
    %v424 = vpop.f32.mrf.mxu0
    %v425 = vadd.f32 %v199, %v424
    %v426 = vpop.f32.mrf.mxu0
    %v427 = vadd.f32 %v203, %v426
    %428 = vmatprep.mubr.bf16.mxu0 %v137
    %429 = vmatmul.mubr.bf16.gmra.mxu0 %v136
    %v430 = vpop.f32.mrf.mxu0
    %v431 = vadd.f32 %v199, %v430
    %v432 = vpop.f32.mrf.mxu0
    %v433 = vadd.f32 %v203, %v432
    %v434 = vpop.f32.mrf.mxu0
    %v435 = vadd.f32 %v199, %v434
    %v436 = vpop.f32.mrf.mxu0
    %v437 = vadd.f32 %v203, %v436
    %438 = vmatprep.mubr.bf16.mxu0 %v139
    %439 = vmatmul.mubr.bf16.gmra.mxu0 %v138
    %v440 = vpop.f32.mrf.mxu0
    %v441 = vadd.f32 %v199, %v440
    %v442 = vpop.f32.mrf.mxu0
    %v443 = vadd.f32 %v203, %v442
    %v444 = vpop.f32.mrf.mxu0
    %v445 = vadd.f32 %v199, %v444
    %v446 = vpop.f32.mrf.mxu0
    %v447 = vadd.f32 %v203, %v446
    %448 = vmatprep.mubr.bf16.mxu0 %v141
    %449 = vmatmul.mubr.bf16.gmra.mxu0 %v140
    %v450 = vpop.f32.mrf.mxu0
    %v451 = vadd.f32 %v199, %v450
    %v452 = vpop.f32.mrf.mxu0
    %v453 = vadd.f32 %v203, %v452
    %v454 = vpop.f32.mrf.mxu0
    %v455 = vadd.f32 %v199, %v454
    %v456 = vpop.f32.mrf.mxu0
    %v457 = vadd.f32 %v203, %v456
    %458 = vmatprep.mubr.bf16.mxu0 %v143
    %459 = vmatmul.mubr.bf16.gmra.mxu0 %v142
    %v460 = vpop.f32.mrf.mxu0
    %v461 = vadd.f32 %v199, %v460
    %v462 = vpop.f32.mrf.mxu0
    %v463 = vadd.f32 %v203, %v462
    %v464 = vpop.f32.mrf.mxu0
    %v465 = vadd.f32 %v199, %v464
    %v466 = vpop.f32.mrf.mxu0
    %v467 = vadd.f32 %v203, %v466
    %468 = vmatprep.mubr.bf16.mxu0 %v145
    %469 = vmatmul.mubr.bf16.gmra.mxu0 %v144
    %v470 = vpop.f32.mrf.mxu0
    %v471 = vadd.f32 %v199, %v470
    %v472 = vpop.f32.mrf.mxu0
    %v473 = vadd.f32 %v203, %v472
    %v474 = vpop.f32.mrf.mxu0
    %v475 = vadd.f32 %v199, %v474
    %v476 = vpop.f32.mrf.mxu0
    %v477 = vadd.f32 %v203, %v476
    %478 = vmatprep.mubr.bf16.mxu0 %v147
    %479 = vmatmul.mubr.bf16.gmra.mxu0 %v146
    %v480 = vpop.f32.mrf.mxu0
    %v481 = vadd.f32 %v199, %v480
    %v482 = vpop.f32.mrf.mxu0
    %v483 = vadd.f32 %v203, %v482
    %v484 = vpop.f32.mrf.mxu0
    %v485 = vadd.f32 %v199, %v484
    %v486 = vpop.f32.mrf.mxu0
    %v487 = vadd.f32 %v203, %v486
    %488 = vmatprep.mubr.bf16.mxu0 %v149
    %489 = vmatmul.mubr.bf16.gmra.mxu0 %v148
    %v490 = vpop.f32.mrf.mxu0
    %v491 = vadd.f32 %v199, %v490
    %v492 = vpop.f32.mrf.mxu0
    %v493 = vadd.f32 %v203, %v492
    %v494 = vpop.f32.mrf.mxu0
    %v495 = vadd.f32 %v199, %v494
    %v496 = vpop.f32.mrf.mxu0
    %v497 = vadd.f32 %v203, %v496
    %498 = vmatprep.mubr.bf16.mxu0 %v151
    %499 = vmatmul.mubr.bf16.gmra.mxu0 %v150
    %v500 = vpop.f32.mrf.mxu0
    %v501 = vadd.f32 %v199, %v500
    %v502 = vpop.f32.mrf.mxu0
    %v503 = vadd.f32 %v203, %v502
    %v504 = vpop.f32.mrf.mxu0
    %v505 = vadd.f32 %v199, %v504
    %v506 = vpop.f32.mrf.mxu0
    %v507 = vadd.f32 %v203, %v506
    %508 = vmatprep.mubr.bf16.mxu0 %v153
    %509 = vmatmul.mubr.bf16.gmra.mxu0 %v152
    %v510 = vpop.f32.mrf.mxu0
    %v511 = vadd.f32 %v199, %v510
    %v512 = vpop.f32.mrf.mxu0
    %v513 = vadd.f32 %v203, %v512
    %v514 = vpop.f32.mrf.mxu0
    %v515 = vadd.f32 %v199, %v514
    %v516 = vpop.f32.mrf.mxu0
    %v517 = vadd.f32 %v203, %v516
    %518 = vmatprep.mubr.bf16.mxu0 %v155
    %519 = vmatmul.mubr.bf16.gmra.mxu0 %v154
    %v520 = vpop.f32.mrf.mxu0
    %v521 = vadd.f32 %v199, %v520
    %v522 = vpop.f32.mrf.mxu0
    %v523 = vadd.f32 %v203, %v522
    %v524 = vpop.f32.mrf.mxu0
    %v525 = vadd.f32 %v199, %v524
    %v526 = vpop.f32.mrf.mxu0
    %v527 = vadd.f32 %v203, %v526
    %528 = vmatprep.mubr.bf16.mxu0 %v157
    %529 = vmatmul.mubr.bf16.gmra.mxu0 %v156
    %v530 = vpop.f32.mrf.mxu0
    %v531 = vadd.f32 %v199, %v530
    %v532 = vpop.f32.mrf.mxu0
    %v533 = vadd.f32 %v203, %v532
    %v534 = vpop.f32.mrf.mxu0
    %v535 = vadd.f32 %v199, %v534
    %v536 = vpop.f32.mrf.mxu0
    %v537 = vadd.f32 %v203, %v536
    %538 = vmatprep.mubr.bf16.mxu0 %v159
    %539 = vmatmul.mubr.bf16.gmra.mxu0 %v158
    %v540 = vpop.f32.mrf.mxu0
    %v541 = vadd.f32 %v199, %v540
    %v542 = vpop.f32.mrf.mxu0
    %v543 = vadd.f32 %v203, %v542
    %v544 = vpop.f32.mrf.mxu0
    %v545 = vadd.f32 %v199, %v544
    %v546 = vpop.f32.mrf.mxu0
    %v547 = vadd.f32 %v203, %v546
    %548 = vmatprep.mubr.bf16.mxu0 %v161
    %549 = vmatmul.mubr.bf16.gmra.mxu0 %v160
    %v550 = vpop.f32.mrf.mxu0
    %v551 = vadd.f32 %v199, %v550
    %v552 = vpop.f32.mrf.mxu0
    %v553 = vadd.f32 %v203, %v552
    %v554 = vpop.f32.mrf.mxu0
    %v555 = vadd.f32 %v199, %v554
    %v556 = vpop.f32.mrf.mxu0
    %v557 = vadd.f32 %v203, %v556
    %558 = vdwg.mxu0
    %v559 = vmax.f32 %v401, 0.0
    %v560 = vmax.f32 %v403, 0.0
    %v561 = vmax.f32 %v405, 0.0
    %v562 = vmax.f32 %v407, 0.0
    %v563 = vmax.f32 %v411, 0.0
    %v564 = vmax.f32 %v413, 0.0
    %v565 = vmax.f32 %v415, 0.0
    %v566 = vmax.f32 %v417, 0.0
    %v567 = vmax.f32 %v421, 0.0
    %v568 = vmax.f32 %v423, 0.0
    %v569 = vmax.f32 %v425, 0.0
    %v570 = vmax.f32 %v427, 0.0
    %v571 = vmax.f32 %v431, 0.0
    %v572 = vmax.f32 %v433, 0.0
    %v573 = vmax.f32 %v435, 0.0
    %v574 = vmax.f32 %v437, 0.0
    %v575 = vmax.f32 %v441, 0.0
    %v576 = vmax.f32 %v443, 0.0
    %v577 = vmax.f32 %v445, 0.0
    %v578 = vmax.f32 %v447, 0.0
    %v579 = vmax.f32 %v451, 0.0
    %v580 = vmax.f32 %v453, 0.0
    %v581 = vmax.f32 %v455, 0.0
    %v582 = vmax.f32 %v457, 0.0
    %v583 = vmax.f32 %v461, 0.0
    %v584 = vmax.f32 %v463, 0.0
    %v585 = vmax.f32 %v465, 0.0
    %v586 = vmax.f32 %v467, 0.0
    %v587 = vmax.f32 %v471, 0.0
    %v588 = vmax.f32 %v473, 0.0
    %v589 = vmax.f32 %v475, 0.0
    %v590 = vmax.f32 %v477, 0.0
    %v591 = vmax.f32 %v481, 0.0
    %v592 = vmax.f32 %v483, 0.0
    %v593 = vmax.f32 %v485, 0.0
    %v594 = vmax.f32 %v487, 0.0
    %v595 = vmax.f32 %v491, 0.0
    %v596 = vmax.f32 %v493, 0.0
    %v597 = vmax.f32 %v495, 0.0
    %v598 = vmax.f32 %v497, 0.0
    %v599 = vmax.f32 %v501, 0.0
    %v600 = vmax.f32 %v503, 0.0
    %v601 = vmax.f32 %v505, 0.0
    %v602 = vmax.f32 %v507, 0.0
    %v603 = vmax.f32 %v511, 0.0
    %v604 = vmax.f32 %v513, 0.0
    %v605 = vmax.f32 %v515, 0.0
    %v606 = vmax.f32 %v517, 0.0
    %v607 = vmax.f32 %v521, 0.0
    %v608 = vmax.f32 %v523, 0.0
    %v609 = vmax.f32 %v525, 0.0
    %v610 = vmax.f32 %v527, 0.0
    %v611 = vmax.f32 %v531, 0.0
    %v612 = vmax.f32 %v533, 0.0
    %v613 = vmax.f32 %v535, 0.0
    %v614 = vmax.f32 %v537, 0.0
    %v615 = vmax.f32 %v541, 0.0
    %v616 = vmax.f32 %v543, 0.0
    %v617 = vmax.f32 %v545, 0.0
    %v618 = vmax.f32 %v547, 0.0
    %v619 = vmax.f32 %v551, 0.0
    %v620 = vmax.f32 %v553, 0.0
    %v621 = vmax.f32 %v555, 0.0
    %v622 = vmax.f32 %v557, 0.0
    %v623 = vpack.c.bf16 %v561, %v559
    %v624 = vpack.c.bf16 %v562, %v560
    %v625 = vpack.c.bf16 %v565, %v563
    %v626 = vpack.c.bf16 %v566, %v564
    %v627 = vpack.c.bf16 %v569, %v567
    %v628 = vpack.c.bf16 %v570, %v568
    %v629 = vpack.c.bf16 %v573, %v571
    %v630 = vpack.c.bf16 %v574, %v572
    %v631 = vpack.c.bf16 %v577, %v575
    %v632 = vpack.c.bf16 %v578, %v576
    %v633 = vpack.c.bf16 %v581, %v579
    %v634 = vpack.c.bf16 %v582, %v580
    %v635 = vpack.c.bf16 %v585, %v583
    %v636 = vpack.c.bf16 %v586, %v584
    %v637 = vpack.c.bf16 %v589, %v587
    %v638 = vpack.c.bf16 %v590, %v588
    %v639 = vpack.c.bf16 %v593, %v591
    %v640 = vpack.c.bf16 %v594, %v592
    %v641 = vpack.c.bf16 %v597, %v595
    %v642 = vpack.c.bf16 %v598, %v596
    %v643 = vpack.c.bf16 %v601, %v599
    %v644 = vpack.c.bf16 %v602, %v600
    %v645 = vpack.c.bf16 %v605, %v603
    %v646 = vpack.c.bf16 %v606, %v604
    %v647 = vpack.c.bf16 %v609, %v607
    %v648 = vpack.c.bf16 %v610, %v608
    %v649 = vpack.c.bf16 %v613, %v611
    %v650 = vpack.c.bf16 %v614, %v612
    %v651 = vpack.c.bf16 %v617, %v615
    %v652 = vpack.c.bf16 %v618, %v616
    %v653 = vpack.c.bf16 %v621, %v619
    %v654 = vpack.c.bf16 %v622, %v620
    %v655 = vld [vmem:[#allocation7] sm:$0xf]
    %v656 = vld [vmem:[#allocation7 + $0x4] sm:$0xf]
    %v657 = vld [vmem:[#allocation7 + $0x8] sm:$0xf]
    %v658 = vld [vmem:[#allocation7 + $0xc] sm:$0xf]
    %v659 = vld [vmem:[#allocation7 + $0x10] sm:$0xf]
    %v660 = vld [vmem:[#allocation7 + $0x14] sm:$0xf]
    %v661 = vld [vmem:[#allocation7 + $0x18] sm:$0xf]
    %v662 = vld [vmem:[#allocation7 + $0x1c] sm:$0xf]
    %v663 = vld [vmem:[#allocation7 + $0x20] sm:$0xf]
    %v664 = vld [vmem:[#allocation7 + $0x24] sm:$0xf]
    %v665 = vld [vmem:[#allocation7 + $0x28] sm:$0xf]
    %v666 = vld [vmem:[#allocation7 + $0x2c] sm:$0xf]
    %v667 = vld [vmem:[#allocation7 + $0x30] sm:$0xf]
    %v668 = vld [vmem:[#allocation7 + $0x34] sm:$0xf]
    %v669 = vld [vmem:[#allocation7 + $0x38] sm:$0xf]
    %v670 = vld [vmem:[#allocation7 + $0x3c] sm:$0xf]
    %v671 = vld [vmem:[#allocation7 + $0x40] sm:$0xf]
    %v672 = vld [vmem:[#allocation7 + $0x44] sm:$0xf]
    %v673 = vld [vmem:[#allocation7 + $0x48] sm:$0xf]
    %v674 = vld [vmem:[#allocation7 + $0x4c] sm:$0xf]
    %v675 = vld [vmem:[#allocation7 + $0x50] sm:$0xf]
    %v676 = vld [vmem:[#allocation7 + $0x54] sm:$0xf]
    %v677 = vld [vmem:[#allocation7 + $0x58] sm:$0xf]
    %v678 = vld [vmem:[#allocation7 + $0x5c] sm:$0xf]
    %v679 = vld [vmem:[#allocation7 + $0x60] sm:$0xf]
    %v680 = vld [vmem:[#allocation7 + $0x64] sm:$0xf]
    %v681 = vld [vmem:[#allocation7 + $0x68] sm:$0xf]
    %v682 = vld [vmem:[#allocation7 + $0x6c] sm:$0xf]
    %v683 = vld [vmem:[#allocation7 + $0x70] sm:$0xf]
    %v684 = vld [vmem:[#allocation7 + $0x74] sm:$0xf]
    %v685 = vld [vmem:[#allocation7 + $0x78] sm:$0xf]
    %v686 = vld [vmem:[#allocation7 + $0x7c] sm:$0xf]
    %v719 = vunpack.c.l.b16 %v655
    %v720 = vunpack.c.l.b16 %v656
    %v721 = vunpack.c.l.b16 %v657
    %v722 = vunpack.c.l.b16 %v658
    %v723 = vunpack.c.l.b16 %v659
    %v724 = vunpack.c.l.b16 %v660
    %v725 = vunpack.c.l.b16 %v661
    %v726 = vunpack.c.l.b16 %v662
    %v727 = vunpack.c.l.b16 %v663
    %v728 = vunpack.c.l.b16 %v664
    %v729 = vunpack.c.l.b16 %v665
    %v730 = vunpack.c.l.b16 %v666
    %v731 = vunpack.c.l.b16 %v667
    %v732 = vunpack.c.l.b16 %v668
    %v733 = vunpack.c.l.b16 %v669
    %v734 = vunpack.c.l.b16 %v670
    %v735 = vunpack.c.l.b16 %v671
    %v736 = vunpack.c.l.b16 %v672
    %v737 = vunpack.c.l.b16 %v673
    %v738 = vunpack.c.l.b16 %v674
    %v739 = vunpack.c.l.b16 %v675
    %v740 = vunpack.c.l.b16 %v676
    %v741 = vunpack.c.l.b16 %v677
    %v742 = vunpack.c.l.b16 %v678
    %v743 = vunpack.c.l.b16 %v679
    %v744 = vunpack.c.l.b16 %v680
    %v745 = vunpack.c.l.b16 %v681
    %v746 = vunpack.c.l.b16 %v682
    %v747 = vunpack.c.l.b16 %v683
    %v748 = vunpack.c.l.b16 %v684
    %v749 = vunpack.c.l.b16 %v685
    %v750 = vunpack.c.l.b16 %v686
    %v751 = vpack.c.b16 %v720, %v719
    %v752 = vpack.c.b16 %v722, %v721
    %v753 = vpack.c.b16 %v724, %v723
    %v754 = vpack.c.b16 %v726, %v725
    %v755 = vpack.c.b16 %v728, %v727
    %v756 = vpack.c.b16 %v730, %v729
    %v757 = vpack.c.b16 %v732, %v731
    %v758 = vpack.c.b16 %v734, %v733
    %v759 = vpack.c.b16 %v736, %v735
    %v760 = vpack.c.b16 %v738, %v737
    %v761 = vpack.c.b16 %v740, %v739
    %v762 = vpack.c.b16 %v742, %v741
    %v763 = vpack.c.b16 %v744, %v743
    %v764 = vpack.c.b16 %v746, %v745
    %v765 = vpack.c.b16 %v748, %v747
    %v766 = vpack.c.b16 %v750, %v749
    %783 = vmatprep.subr.bf16.mxu0 0
    %784 = vmatpush1.bf16.msra.mxu0 %v758
    %785 = vmatprep.subr.bf16.mxu0 0
    %786 = vmatpush1.bf16.msra.mxu0 %v757
    %787 = vmatprep.subr.bf16.mxu0 0
    %788 = vmatpush1.bf16.msra.mxu0 %v756
    %789 = vmatprep.subr.bf16.mxu0 0
    %790 = vmatpush1.bf16.msra.mxu0 %v755
    %791 = vmatprep.subr.bf16.mxu0 0
    %792 = vmatpush1.bf16.msra.mxu0 %v754
    %793 = vmatprep.subr.bf16.mxu0 0
    %794 = vmatpush1.bf16.msra.mxu0 %v753
    %795 = vmatprep.subr.bf16.mxu0 0
    %796 = vmatpush1.bf16.msra.mxu0 %v752
    %797 = vmatprep.subr.bf16.mxu0 0
    %798 = vmatpush1.bf16.msra.mxu0 %v751
    %799 = vmatprep.subr.bf16.mxu0 0
    %800 = vmatpush2.bf16.msra.mxu0 %v766
    %801 = vmatprep.subr.bf16.mxu0 0
    %802 = vmatpush2.bf16.msra.mxu0 %v765
    %803 = vmatprep.subr.bf16.mxu0 0
    %804 = vmatpush2.bf16.msra.mxu0 %v764
    %805 = vmatprep.subr.bf16.mxu0 0
    %806 = vmatpush2.bf16.msra.mxu0 %v763
    %807 = vmatprep.subr.bf16.mxu0 0
    %808 = vmatpush2.bf16.msra.mxu0 %v762
    %809 = vmatprep.subr.bf16.mxu0 0
    %810 = vmatpush2.bf16.msra.mxu0 %v761
    %811 = vmatprep.subr.bf16.mxu0 0
    %812 = vmatpush2.bf16.msra.mxu0 %v760
    %813 = vmatprep.subr.bf16.mxu0 0
    %814 = vmatpush2.bf16.msra.mxu0 %v759
    %815 = vmatprep.mubr.bf16.mxu0 %v624
    %816 = vmatmul.mubr.bf16.gmra.mxu0 %v623
    %v817 = vpop.f32.mrf.mxu0
    %v818 = vadd.f32 0.0, %v817
    %v819 = vpop.f32.mrf.mxu0
    %v820 = vpop.f32.mrf.mxu0
    %v821 = vadd.f32 0.0, %v820
    %v822 = vpop.f32.mrf.mxu0
    %823 = vmatprep.mubr.bf16.mxu0 %v626
    %824 = vmatmul.mubr.bf16.gmra.mxu0 %v625
    %v825 = vpop.f32.mrf.mxu0
    %v826 = vadd.f32 0.0, %v825
    %v827 = vpop.f32.mrf.mxu0
    %v828 = vpop.f32.mrf.mxu0
    %v829 = vadd.f32 0.0, %v828
    %v830 = vpop.f32.mrf.mxu0
    %831 = vmatprep.mubr.bf16.mxu0 %v628
    %832 = vmatmul.mubr.bf16.gmra.mxu0 %v627
    %v833 = vpop.f32.mrf.mxu0
    %v834 = vadd.f32 0.0, %v833
    %v835 = vpop.f32.mrf.mxu0
    %v836 = vpop.f32.mrf.mxu0
    %v837 = vadd.f32 0.0, %v836
    %v838 = vpop.f32.mrf.mxu0
    %839 = vmatprep.mubr.bf16.mxu0 %v630
    %840 = vmatmul.mubr.bf16.gmra.mxu0 %v629
    %v841 = vpop.f32.mrf.mxu0
    %v842 = vadd.f32 0.0, %v841
    %v843 = vpop.f32.mrf.mxu0
    %v844 = vpop.f32.mrf.mxu0
    %v845 = vadd.f32 0.0, %v844
    %v846 = vpop.f32.mrf.mxu0
    %847 = vmatprep.mubr.bf16.mxu0 %v632
    %848 = vmatmul.mubr.bf16.gmra.mxu0 %v631
    %v849 = vpop.f32.mrf.mxu0
    %v850 = vadd.f32 0.0, %v849
    %v851 = vpop.f32.mrf.mxu0
    %v852 = vpop.f32.mrf.mxu0
    %v853 = vadd.f32 0.0, %v852
    %v854 = vpop.f32.mrf.mxu0
    %855 = vmatprep.mubr.bf16.mxu0 %v634
    %856 = vmatmul.mubr.bf16.gmra.mxu0 %v633
    %v857 = vpop.f32.mrf.mxu0
    %v858 = vadd.f32 0.0, %v857
    %v859 = vpop.f32.mrf.mxu0
    %v860 = vpop.f32.mrf.mxu0
    %v861 = vadd.f32 0.0, %v860
    %v862 = vpop.f32.mrf.mxu0
    %863 = vmatprep.mubr.bf16.mxu0 %v636
    %864 = vmatmul.mubr.bf16.gmra.mxu0 %v635
    %v865 = vpop.f32.mrf.mxu0
    %v866 = vadd.f32 0.0, %v865
    %v867 = vpop.f32.mrf.mxu0
    %v868 = vpop.f32.mrf.mxu0
    %v869 = vadd.f32 0.0, %v868
    %v870 = vpop.f32.mrf.mxu0
    %871 = vmatprep.mubr.bf16.mxu0 %v638
    %872 = vmatmul.mubr.bf16.gmra.mxu0 %v637
    %v873 = vpop.f32.mrf.mxu0
    %v874 = vadd.f32 0.0, %v873
    %v875 = vpop.f32.mrf.mxu0
    %v876 = vpop.f32.mrf.mxu0
    %v877 = vadd.f32 0.0, %v876
    %v878 = vpop.f32.mrf.mxu0
    %879 = vmatprep.mubr.bf16.mxu0 %v640
    %880 = vmatmul.mubr.bf16.gmra.mxu0 %v639
    %v881 = vpop.f32.mrf.mxu0
    %v882 = vadd.f32 0.0, %v881
    %v883 = vpop.f32.mrf.mxu0
    %v884 = vpop.f32.mrf.mxu0
    %v885 = vadd.f32 0.0, %v884
    %v886 = vpop.f32.mrf.mxu0
    %887 = vmatprep.mubr.bf16.mxu0 %v642
    %888 = vmatmul.mubr.bf16.gmra.mxu0 %v641
    %v889 = vpop.f32.mrf.mxu0
    %v890 = vadd.f32 0.0, %v889
    %v891 = vpop.f32.mrf.mxu0
    %v892 = vpop.f32.mrf.mxu0
    %v893 = vadd.f32 0.0, %v892
    %v894 = vpop.f32.mrf.mxu0
    %895 = vmatprep.mubr.bf16.mxu0 %v644
    %896 = vmatmul.mubr.bf16.gmra.mxu0 %v643
    %v897 = vpop.f32.mrf.mxu0
    %v898 = vadd.f32 0.0, %v897
    %v899 = vpop.f32.mrf.mxu0
    %v900 = vpop.f32.mrf.mxu0
    %v901 = vadd.f32 0.0, %v900
    %v902 = vpop.f32.mrf.mxu0
    %903 = vmatprep.mubr.bf16.mxu0 %v646
    %904 = vmatmul.mubr.bf16.gmra.mxu0 %v645
    %v905 = vpop.f32.mrf.mxu0
    %v906 = vadd.f32 0.0, %v905
    %v907 = vpop.f32.mrf.mxu0
    %v908 = vpop.f32.mrf.mxu0
    %v909 = vadd.f32 0.0, %v908
    %v910 = vpop.f32.mrf.mxu0
    %911 = vmatprep.mubr.bf16.mxu0 %v648
    %912 = vmatmul.mubr.bf16.gmra.mxu0 %v647
    %v913 = vpop.f32.mrf.mxu0
    %v914 = vadd.f32 0.0, %v913
    %v915 = vpop.f32.mrf.mxu0
    %v916 = vpop.f32.mrf.mxu0
    %v917 = vadd.f32 0.0, %v916
    %v918 = vpop.f32.mrf.mxu0
    %919 = vmatprep.mubr.bf16.mxu0 %v650
    %920 = vmatmul.mubr.bf16.gmra.mxu0 %v649
    %v921 = vpop.f32.mrf.mxu0
    %v922 = vadd.f32 0.0, %v921
    %v923 = vpop.f32.mrf.mxu0
    %v924 = vpop.f32.mrf.mxu0
    %v925 = vadd.f32 0.0, %v924
    %v926 = vpop.f32.mrf.mxu0
    %927 = vmatprep.mubr.bf16.mxu0 %v652
    %928 = vmatmul.mubr.bf16.gmra.mxu0 %v651
    %v929 = vpop.f32.mrf.mxu0
    %v930 = vadd.f32 0.0, %v929
    %v931 = vpop.f32.mrf.mxu0
    %v932 = vpop.f32.mrf.mxu0
    %v933 = vadd.f32 0.0, %v932
    %v934 = vpop.f32.mrf.mxu0
    %935 = vmatprep.mubr.bf16.mxu0 %v654
    %936 = vmatmul.mubr.bf16.gmra.mxu0 %v653
    %v937 = vpop.f32.mrf.mxu0
    %v938 = vadd.f32 0.0, %v937
    %v939 = vpop.f32.mrf.mxu0
    %v940 = vpop.f32.mrf.mxu0
    %v941 = vadd.f32 0.0, %v940
    %v942 = vpop.f32.mrf.mxu0
    %943 = vdwg.mxu0
    %v944 = vadd.f32 %v818, %v821
    %v945 = vadd.f32 %v944, %v826
    %v946 = vadd.f32 %v945, %v829
    %v947 = vadd.f32 %v946, %v834
    %v948 = vadd.f32 %v947, %v837
    %v949 = vadd.f32 %v948, %v842
    %v950 = vadd.f32 %v949, %v845
    %v951 = vadd.f32 %v950, %v850
    %v952 = vadd.f32 %v951, %v853
    %v953 = vadd.f32 %v952, %v858
    %v954 = vadd.f32 %v953, %v861
    %v955 = vadd.f32 %v954, %v866
    %v956 = vadd.f32 %v955, %v869
    %v957 = vadd.f32 %v956, %v874
    %v958 = vadd.f32 %v957, %v877
    %v959 = vadd.f32 %v958, %v882
    %v960 = vadd.f32 %v959, %v885
    %v961 = vadd.f32 %v960, %v890
    %v962 = vadd.f32 %v961, %v893
    %v963 = vadd.f32 %v962, %v898
    %v964 = vadd.f32 %v963, %v901
    %v965 = vadd.f32 %v964, %v906
    %v966 = vadd.f32 %v965, %v909
    %v967 = vadd.f32 %v966, %v914
    %v968 = vadd.f32 %v967, %v917
    %v969 = vadd.f32 %v968, %v922
    %v970 = vadd.f32 %v969, %v925
    %v971 = vadd.f32 %v970, %v930
    %v972 = vadd.f32 %v971, %v933
    %v973 = vadd.f32 %v972, %v938
    %v974 = vadd.f32 %v973, %v941
    %v975 = vrot.slane %v974, 4
    %v976 = vadd.f32 %v974, %v975
    %v977 = vrot.slane %v976, 2
    %v978 = vadd.f32 %v976, %v977
    %v979 = vrot.slane %v978, 1
    %v980 = vadd.f32 %v978, %v979
    %v981 = vrcp.pop 256.0
    %v982 = vmul.f32 %v980, %v981
    %v983 = vsub.f32 %v818, %v982
    %v984 = vsub.f32 %v821, %v982
    %v985 = vsub.f32 %v826, %v982
    %v986 = vsub.f32 %v829, %v982
    %v987 = vsub.f32 %v834, %v982
    %v988 = vsub.f32 %v837, %v982
    %v989 = vsub.f32 %v842, %v982
    %v990 = vsub.f32 %v845, %v982
    %v991 = vsub.f32 %v850, %v982
    %v992 = vsub.f32 %v853, %v982
    %v993 = vsub.f32 %v858, %v982
    %v994 = vsub.f32 %v861, %v982
    %v995 = vsub.f32 %v866, %v982
    %v996 = vsub.f32 %v869, %v982
    %v997 = vsub.f32 %v874, %v982
    %v998 = vsub.f32 %v877, %v982
    %v999 = vsub.f32 %v882, %v982
    %v1000 = vsub.f32 %v885, %v982
    %v1001 = vsub.f32 %v890, %v982
    %v1002 = vsub.f32 %v893, %v982
    %v1003 = vsub.f32 %v898, %v982
    %v1004 = vsub.f32 %v901, %v982
    %v1005 = vsub.f32 %v906, %v982
    %v1006 = vsub.f32 %v909, %v982
    %v1007 = vsub.f32 %v914, %v982
    %v1008 = vsub.f32 %v917, %v982
    %v1009 = vsub.f32 %v922, %v982
    %v1010 = vsub.f32 %v925, %v982
    %v1011 = vsub.f32 %v930, %v982
    %v1012 = vsub.f32 %v933, %v982
    %v1013 = vsub.f32 %v938, %v982
    %v1014 = vsub.f32 %v941, %v982
    %v1015 = vmul.f32 %v983, %v983
    %v1016 = vmul.f32 %v984, %v984
    %v1017 = vmul.f32 %v985, %v985
    %v1018 = vmul.f32 %v986, %v986
    %v1019 = vmul.f32 %v987, %v987
    %v1020 = vmul.f32 %v988, %v988
    %v1021 = vmul.f32 %v989, %v989
    %v1022 = vmul.f32 %v990, %v990
    %v1023 = vmul.f32 %v991, %v991
    %v1024 = vmul.f32 %v992, %v992
    %v1025 = vmul.f32 %v993, %v993
    %v1026 = vmul.f32 %v994, %v994
    %v1027 = vmul.f32 %v995, %v995
    %v1028 = vmul.f32 %v996, %v996
    %v1029 = vmul.f32 %v997, %v997
    %v1030 = vmul.f32 %v998, %v998
    %v1031 = vmul.f32 %v999, %v999
    %v1032 = vmul.f32 %v1000, %v1000
    %v1033 = vmul.f32 %v1001, %v1001
    %v1034 = vmul.f32 %v1002, %v1002
    %v1035 = vmul.f32 %v1003, %v1003
    %v1036 = vmul.f32 %v1004, %v1004
    %v1037 = vmul.f32 %v1005, %v1005
    %v1038 = vmul.f32 %v1006, %v1006
    %v1039 = vmul.f32 %v1007, %v1007
    %v1040 = vmul.f32 %v1008, %v1008
    %v1041 = vmul.f32 %v1009, %v1009
    %v1042 = vmul.f32 %v1010, %v1010
    %v1043 = vmul.f32 %v1011, %v1011
    %v1044 = vmul.f32 %v1012, %v1012
    %v1045 = vmul.f32 %v1013, %v1013
    %v1046 = vmul.f32 %v1014, %v1014
    %v1047 = vadd.f32 %v1015, %v1016
    %v1048 = vadd.f32 %v1047, %v1017
    %v1049 = vadd.f32 %v1048, %v1018
    %v1050 = vadd.f32 %v1049, %v1019
    %v1051 = vadd.f32 %v1050, %v1020
    %v1052 = vadd.f32 %v1051, %v1021
    %v1053 = vadd.f32 %v1052, %v1022
    %v1054 = vadd.f32 %v1053, %v1023
    %v1055 = vadd.f32 %v1054, %v1024
    %v1056 = vadd.f32 %v1055, %v1025
    %v1057 = vadd.f32 %v1056, %v1026
    %v1058 = vadd.f32 %v1057, %v1027
    %v1059 = vadd.f32 %v1058, %v1028
    %v1060 = vadd.f32 %v1059, %v1029
    %v1061 = vadd.f32 %v1060, %v1030
    %v1062 = vadd.f32 %v1061, %v1031
    %v1063 = vadd.f32 %v1062, %v1032
    %v1064 = vadd.f32 %v1063, %v1033
    %v1065 = vadd.f32 %v1064, %v1034
    %v1066 = vadd.f32 %v1065, %v1035
    %v1067 = vadd.f32 %v1066, %v1036
    %v1068 = vadd.f32 %v1067, %v1037
    %v1069 = vadd.f32 %v1068, %v1038
    %v1070 = vadd.f32 %v1069, %v1039
    %v1071 = vadd.f32 %v1070, %v1040
    %v1072 = vadd.f32 %v1071, %v1041
    %v1073 = vadd.f32 %v1072, %v1042
    %v1074 = vadd.f32 %v1073, %v1043
    %v1075 = vadd.f32 %v1074, %v1044
    %v1076 = vadd.f32 %v1075, %v1045
    %v1077 = vadd.f32 %v1076, %v1046
    %v1078 = vrot.slane %v1077, 4
    %v1079 = vadd.f32 %v1077, %v1078
    %v1080 = vrot.slane %v1079, 2
    %v1081 = vadd.f32 %v1079, %v1080
    %v1082 = vrot.slane %v1081, 1
    %v1083 = vadd.f32 %v1081, %v1082
    %v1084 = vmul.f32 %v1083, %v981
    %v1085 = vld [vmem:[%s4] sm:$0x1]
    %v1086 = vadd.f32 %v1084, 1e-05
    %v1087 = vrsqrt.pop %v1086
    %v1088 = vmul.f32 %v1085, %v1087
    %v1089 = vld [vmem:[%s5] sm:$0x1]
    %v1090 = vmul.f32 %v982, %v1088
    %v1091 = vsub.f32 %v1089, %v1090
    %v1093 = vlaneseq
    %v1094 = vshrl.u32 %v1093, 7
    %v1095 = vsub.s32 0, %v1094
    %v1096 = vrot.slane %v1088, %v1095
    %v1098 = vmul.f32 %v818, %v1096
    %v1099 = vmul.f32 %v821, %v1096
    %v1100 = vmul.f32 %v826, %v1096
    %v1101 = vmul.f32 %v829, %v1096
    %v1102 = vmul.f32 %v834, %v1096
    %v1103 = vmul.f32 %v837, %v1096
    %v1104 = vmul.f32 %v842, %v1096
    %v1105 = vmul.f32 %v845, %v1096
    %v1106 = vmul.f32 %v850, %v1096
    %v1107 = vmul.f32 %v853, %v1096
    %v1108 = vmul.f32 %v858, %v1096
    %v1109 = vmul.f32 %v861, %v1096
    %v1110 = vmul.f32 %v866, %v1096
    %v1111 = vmul.f32 %v869, %v1096
    %v1112 = vmul.f32 %v874, %v1096
    %v1113 = vmul.f32 %v877, %v1096
    %v1114 = vmul.f32 %v882, %v1096
    %v1115 = vmul.f32 %v885, %v1096
    %v1116 = vmul.f32 %v890, %v1096
    %v1117 = vmul.f32 %v893, %v1096
    %v1118 = vmul.f32 %v898, %v1096
    %v1119 = vmul.f32 %v901, %v1096
    %v1120 = vmul.f32 %v906, %v1096
    %v1121 = vmul.f32 %v909, %v1096
    %v1122 = vmul.f32 %v914, %v1096
    %v1123 = vmul.f32 %v917, %v1096
    %v1124 = vmul.f32 %v922, %v1096
    %v1125 = vmul.f32 %v925, %v1096
    %v1126 = vmul.f32 %v930, %v1096
    %v1127 = vmul.f32 %v933, %v1096
    %v1128 = vmul.f32 %v938, %v1096
    %v1129 = vmul.f32 %v941, %v1096
    %v1131 = vlaneseq
    %v1132 = vshrl.u32 %v1131, 7
    %v1133 = vsub.s32 0, %v1132
    %v1134 = vrot.slane %v1091, %v1133
    %v1136 = vadd.f32 %v1098, %v1134
    %v1137 = vadd.f32 %v1099, %v1134
    %v1138 = vadd.f32 %v1100, %v1134
    %v1139 = vadd.f32 %v1101, %v1134
    %v1140 = vadd.f32 %v1102, %v1134
    %v1141 = vadd.f32 %v1103, %v1134
    %v1142 = vadd.f32 %v1104, %v1134
    %v1143 = vadd.f32 %v1105, %v1134
    %v1144 = vadd.f32 %v1106, %v1134
    %v1145 = vadd.f32 %v1107, %v1134
    %v1146 = vadd.f32 %v1108, %v1134
    %v1147 = vadd.f32 %v1109, %v1134
    %v1148 = vadd.f32 %v1110, %v1134
    %v1149 = vadd.f32 %v1111, %v1134
    %v1150 = vadd.f32 %v1112, %v1134
    %v1151 = vadd.f32 %v1113, %v1134
    %v1152 = vadd.f32 %v1114, %v1134
    %v1153 = vadd.f32 %v1115, %v1134
    %v1154 = vadd.f32 %v1116, %v1134
    %v1155 = vadd.f32 %v1117, %v1134
    %v1156 = vadd.f32 %v1118, %v1134
    %v1157 = vadd.f32 %v1119, %v1134
    %v1158 = vadd.f32 %v1120, %v1134
    %v1159 = vadd.f32 %v1121, %v1134
    %v1160 = vadd.f32 %v1122, %v1134
    %v1161 = vadd.f32 %v1123, %v1134
    %v1162 = vadd.f32 %v1124, %v1134
    %v1163 = vadd.f32 %v1125, %v1134
    %v1164 = vadd.f32 %v1126, %v1134
    %v1165 = vadd.f32 %v1127, %v1134
    %v1166 = vadd.f32 %v1128, %v1134
    %v1167 = vadd.f32 %v1129, %v1134
    %1168 = vst [vmem:[#allocation8] sm:$0xff] %v1136
    %1169 = vst [vmem:[#allocation8 + $0x8] sm:$0xff] %v1137
    %1170 = vst [vmem:[#allocation8 + $0x10] sm:$0xff] %v1138
    %1171 = vst [vmem:[#allocation8 + $0x18] sm:$0xff] %v1139
    %1172 = vst [vmem:[#allocation8 + $0x20] sm:$0xff] %v1140
    %1173 = vst [vmem:[#allocation8 + $0x28] sm:$0xff] %v1141
    %1174 = vst [vmem:[#allocation8 + $0x30] sm:$0xff] %v1142
    %1175 = vst [vmem:[#allocation8 + $0x38] sm:$0xff] %v1143
    %1176 = vst [vmem:[#allocation8 + $0x40] sm:$0xff] %v1144
    %1177 = vst [vmem:[#allocation8 + $0x48] sm:$0xff] %v1145
    %1178 = vst [vmem:[#allocation8 + $0x50] sm:$0xff] %v1146
    %1179 = vst [vmem:[#allocation8 + $0x58] sm:$0xff] %v1147
    %1180 = vst [vmem:[#allocation8 + $0x60] sm:$0xff] %v1148
    %1181 = vst [vmem:[#allocation8 + $0x68] sm:$0xff] %v1149
    %1182 = vst [vmem:[#allocation8 + $0x70] sm:$0xff] %v1150
    %1183 = vst [vmem:[#allocation8 + $0x78] sm:$0xff] %v1151
    %1184 = vst [vmem:[#allocation8 + $0x80] sm:$0xff] %v1152
    %1185 = vst [vmem:[#allocation8 + $0x88] sm:$0xff] %v1153
    %1186 = vst [vmem:[#allocation8 + $0x90] sm:$0xff] %v1154
    %1187 = vst [vmem:[#allocation8 + $0x98] sm:$0xff] %v1155
    %1188 = vst [vmem:[#allocation8 + $0xa0] sm:$0xff] %v1156
    %1189 = vst [vmem:[#allocation8 + $0xa8] sm:$0xff] %v1157
    %1190 = vst [vmem:[#allocation8 + $0xb0] sm:$0xff] %v1158
    %1191 = vst [vmem:[#allocation8 + $0xb8] sm:$0xff] %v1159
    %1192 = vst [vmem:[#allocation8 + $0xc0] sm:$0xff] %v1160
    %1193 = vst [vmem:[#allocation8 + $0xc8] sm:$0xff] %v1161
    %1194 = vst [vmem:[#allocation8 + $0xd0] sm:$0xff] %v1162
    %1195 = vst [vmem:[#allocation8 + $0xd8] sm:$0xff] %v1163
    %1196 = vst [vmem:[#allocation8 + $0xe0] sm:$0xff] %v1164
    %1197 = vst [vmem:[#allocation8 + $0xe8] sm:$0xff] %v1165
    %1198 = vst [vmem:[#allocation8 + $0xf0] sm:$0xff] %v1166
    %1199 = vst [vmem:[#allocation8 + $0xf8] sm:$0xff] %v1167
    // Predicated region
    $region38: #{tpu_custom_call.1} parent=1 // pred_check
      _
    $region39: #{tpu_custom_call.1} parent=1 // pred_check_branch
      %1201 = sbr.rel (0) target = $region41
    $region40: #{tpu_custom_call.1} parent=1 // pred_region
      %s1203 = ssub.s32 4096, 4096
      %1204 = vsyncadd [#allocation4], %s1203
      %s1205 = sshll.u32 [#allocation8], 4
      %s1206 = int_to_ptr.vmem [resolvable:$true] %s1205
      %1211 = dma.vmem_to_hbm [thread:$0]  %s1206, 4096, %s6, [#allocation4], 128, 128, 8
    $region41: #{tpu_custom_call.1} parent=1 // pred_fallthru
      _
    // Predicated region
    $region42: #{tpu_custom_call.1} parent=1 // pred_check
      _
    $region43: #{tpu_custom_call.1} parent=1 // pred_check_branch
      %1213 = sbr.rel (0) target = $region45
    $region44: #{tpu_custom_call.1} parent=1 // pred_region
      %1214 = dma.done [#allocation4], 4096
    $region45: #{tpu_custom_call.1} parent=1 // pred_fallthru
      _
    %1215 = vsyncpa [#allocation3], 1
    %1216 = vsyncpa [#allocation6], 1
    %1217 = vsyncpa [#allocation4], 1

</llo_original>
